<compile_context>
chip_gen: v5e
topology: v5e:2x2
jax: 0.10.0
libtpu: 0.0.40
codegen_flags: <defaults>
</compile_context>

<pallas_src>
import functools

import jax
import jax.numpy as jnp
from jax.experimental import pallas as pl
from jax.experimental.pallas import tpu as pltpu

_LANE = 128   # lane width: feature dim padded to a multiple of this
_SUB = 8      # sublane width: per-sample output row padded to this


def _largest_divisor_leq(n, cap):
    t = min(n, cap)
    while n % t:
        t -= 1
    return t


# ---------------------------------------------------------------------------
# Fused kernel: stem conv (+bias+swish) -> pooled-sum accumulator -> Linear
# ---------------------------------------------------------------------------
def _fused_kernel(xq_ref, wd_ref, sb_ref, cw_ref, cb_ref, o_ref, acc_ref, *,
                  th, wo, nt, inv_s, cp):
    t = pl.program_id(1)

    @pl.when(t == 0)
    def _init():
        acc_ref[...] = jnp.zeros_like(acc_ref)

    rows = th * wo
    conv = jnp.zeros((rows, cp), jnp.float32)
    # stride-2 3x3 conv == 4 shifted matmuls against phase-folded weights
    for di in range(2):
        for dj in range(2):
            xs = xq_ref[0, pl.ds(t * th + di, th), pl.ds(dj, wo), :]   # [th, wo, 4*Cin] bf16
            conv = conv + jnp.dot(
                xs.reshape(rows, xs.shape[-1]),
                wd_ref[di * 2 + dj],
                preferred_element_type=jnp.float32,
            )
    y = conv + sb_ref[...]                 # f32 bias
    y = y * jax.nn.sigmoid(y)              # swish / SiLU (f32 epilogue)
    acc_ref[...] += jnp.sum(y, axis=0, keepdims=True)   # running pooled sum

    @pl.when(t == nt - 1)
    def _finalize():
        pooled = acc_ref[...] * inv_s                                   # [1, cp]
        logit = jnp.sum(pooled * cw_ref[...], axis=-1, keepdims=True)   # Linear(Cfeat, 1)
        logit = logit + cb_ref[...]                                     # [1, 1]
        o_ref[0] = jnp.broadcast_to(logit, (_SUB, cp))                  # lane-dense store


# ---------------------------------------------------------------------------
# Model wrapper
# ---------------------------------------------------------------------------
def model_forward(x, params):
    B, Cin, H, W = x.shape
    assert H % 2 == 0 and W % 2 == 0, "even spatial dims expected"
    Ho, Wo = H // 2, W // 2
    Hq, Wq = Ho + 1, Wo + 1                 # +1 halo for the 3x3 taps
    S = Ho * Wo

    stem_w = params["stem_w"]               # [Cout, Cin, 3, 3]
    stem_b = params["stem_b"]               # [Cout]
    cls_w = params["cls_w"]                 # [1, Cout]  (torch Linear layout)
    cls_b = params["cls_b"]                 # [1]
    Cout = stem_w.shape[0]
    CP = ((Cout + _LANE - 1) // _LANE) * _LANE   # lane-padded feature dim
    PC = 4 * Cin                                  # phase-folded input channels

    # --- input: NHWC pad + stride-2 phase split with +1 halo (no im2col slab) ---
    xn = jnp.transpose(x, (0, 2, 3, 1))
    xp = jnp.pad(xn, ((0, 0), (1, 1), (1, 1), (0, 0)))
    phases = []
    for pi in range(2):
        for pj in range(2):
            phases.append(xp[:, pi:pi + 2 * Hq - 1:2, pj:pj + 2 * Wq - 1:2, :])
    xq = jnp.stack(phases, axis=3).reshape(B, Hq, Wq, PC).astype(jnp.bfloat16)

    # --- fold the 9 conv taps into 4 offset weight matrices [4*Cin, CP] ---
    wd = jnp.zeros((4, PC, CP), jnp.float32)
    for i in range(3):
        for j in range(3):
            di, pi, dj, pj = i // 2, i % 2, j // 2, j % 2
            ph = pi * 2 + pj
            wd = wd.at[di * 2 + dj, ph * Cin:(ph + 1) * Cin, :Cout].set(
                stem_w[:, :, i, j].T)
    wd = wd.astype(jnp.bfloat16)

    sb = jnp.zeros((1, CP), jnp.float32).at[0, :Cout].set(stem_b)      # stem bias (padded)
    cw = jnp.zeros((1, CP), jnp.float32).at[0, :Cout].set(cls_w[0])    # cls weights (padded)
    cb = cls_b.reshape(1, 1).astype(jnp.float32)                       # cls bias

    TH = _largest_divisor_leq(Ho, 64)       # output-height rows per grid step
    NT = Ho // TH

    kernel = functools.partial(_fused_kernel, th=TH, wo=Wo, nt=NT,
                               inv_s=float(1.0 / S), cp=CP)

    cost = pl.CostEstimate(
        flops=2 * B * S * 9 * Cin * Cout + 2 * B * Cout,
        transcendentals=B * S * Cout,
        bytes_accessed=xq.size * 2 + wd.size * 2 + B * _SUB * CP * 4,
    )

    out = pl.pallas_call(
        kernel,
        out_shape=jax.ShapeDtypeStruct((B, _SUB, CP), jnp.float32),
        grid_spec=pltpu.PrefetchScalarGridSpec(
            num_scalar_prefetch=0,
            grid=(B, NT),
            in_specs=[
                # per-sample phase slab: resident across the row-tile axis
                pl.BlockSpec((1, Hq, Wq, PC), lambda b, t: (b, 0, 0, 0)),
                pl.BlockSpec((4, PC, CP), lambda b, t: (0, 0, 0)),
                pl.BlockSpec((1, CP), lambda b, t: (0, 0)),
                pl.BlockSpec((1, CP), lambda b, t: (0, 0)),
                pl.BlockSpec((1, 1), lambda b, t: (0, 0)),
            ],
            out_specs=pl.BlockSpec((1, _SUB, CP), lambda b, t: (b, 0, 0)),
            scratch_shapes=[pltpu.VMEM((1, CP), jnp.float32)],
        ),
        compiler_params=pltpu.CompilerParams(
            dimension_semantics=("parallel", "arbitrary")),
        cost_estimate=cost,
    )(xq, wd, sb, cw, cb)

    return out[:, 0, :1]                     # [B, 1]


model_forward_jit = jax.jit(model_forward)


# ---------------------------------------------------------------------------
# Pure-JAX reference (same math) for a correctness check
# ---------------------------------------------------------------------------
def reference_forward(x, params):
    y = jax.lax.conv_general_dilated(
        x, params["stem_w"], window_strides=(2, 2), padding=((1, 1), (1, 1)),
        dimension_numbers=("NCHW", "OIHW", "NCHW"))
    y = y + params["stem_b"][None, :, None, None]
    y = y * jax.nn.sigmoid(y)
    pooled = jnp.mean(y, axis=(2, 3))
    return pooled @ params["cls_w"].T + params["cls_b"]


if __name__ == "__main__":
    key = jax.random.PRNGKey(0)
    kx, k1, k2, k3 = jax.random.split(key, 4)

    B, C, H, W = 2, 3, 16, 16
    CFEAT = 32
    x = jax.random.normal(kx, (B, C, H, W), jnp.float32)   # NCHW, like PyTorch
    params = {
        "stem_w": 0.1 * jax.random.normal(k1, (CFEAT, C, 3, 3), jnp.float32),
        "stem_b": 0.05 * jax.random.normal(k2, (CFEAT,), jnp.float32),
        "cls_w": 0.1 * jax.random.normal(k3, (1, CFEAT), jnp.float32),
        "cls_b": jnp.full((1,), 0.01, jnp.float32),
    }

    out = jax.block_until_ready(model_forward_jit(x, params))
    assert out.shape == (B, 1), out.shape
    assert bool(jnp.all(jnp.isfinite(out)))

    ref = jax.block_until_ready(reference_forward(x, params))
    assert bool(jnp.allclose(out, ref, atol=5e-2, rtol=5e-2)), (out, ref)

    print("KERNEL_OK")
</pallas_src>

<mosaic_0001>
module attributes {stable_mosaic.version = 11 : i64} {
  func.func @_fused_kernel(%arg0: i32, %arg1: i32, %arg2: memref<1x9x9x12xbf16, #tpu.memory_space<vmem>>, %arg3: memref<4x12x128xbf16, #tpu.memory_space<vmem>>, %arg4: memref<1x128xf32, #tpu.memory_space<vmem>>, %arg5: memref<1x128xf32, #tpu.memory_space<vmem>>, %arg6: memref<1x1xf32, #tpu.memory_space<vmem>>, %arg7: memref<1x8x128xf32, #tpu.memory_space<vmem>>, %arg8: memref<1x128xf32, #tpu.memory_space<vmem>>) attributes {dimension_semantics = [#tpu.dimension_semantics<parallel>, #tpu.dimension_semantics<arbitrary>], iteration_bounds = array<i64: 2, 1>, scalar_prefetch = 0 : i64, scratch_operands = 1 : i64, tpu.core_type = #tpu.core_type<tc>, window_params = [{transform_indices = @transform_0, window_bounds = array<i64: 1, 9, 9, 12>}, {pipeline_mode = #tpu.pipeline_mode<synchronous>, transform_indices = @transform_1, window_bounds = array<i64: 4, 12, 128>}, {pipeline_mode = #tpu.pipeline_mode<synchronous>, transform_indices = @transform_2, window_bounds = array<i64: 1, 128>}, {pipeline_mode = #tpu.pipeline_mode<synchronous>, transform_indices = @transform_3, window_bounds = array<i64: 1, 128>}, {pipeline_mode = #tpu.pipeline_mode<synchronous>, transform_indices = @transform_4, window_bounds = array<i64: 1, 1>}, {transform_indices = @transform_5, window_bounds = array<i64: 1, 8, 128>}]} {
    %c0_i32 = arith.constant 0 : i32
    %0 = arith.cmpi eq, %arg1, %c0_i32 : i32
    %1 = arith.extui %0 : i1 to i32
    %c0_i32_0 = arith.constant 0 : i32
    %2 = arith.cmpi ne, %1, %c0_i32_0 : i32
    scf.if %2 {
      %cst_41 = arith.constant 0.000000e+00 : f32
      %61 = vector.broadcast %cst_41 : f32 to vector<1x128xf32>
      %c0_42 = arith.constant 0 : index
      %c0_43 = arith.constant 0 : index
      %62 = vector.load %arg8[%c0_42, %c0_43] : memref<1x128xf32, #tpu.memory_space<vmem>>, vector<1x128xf32>
      tpu.vector_store %arg8[%c0_42, %c0_43], %61 {strides = array<i32>} : memref<1x128xf32, #tpu.memory_space<vmem>>, vector<1x128xf32>,
    } else {
    }
    %cst = arith.constant 0.000000e+00 : f32
    %3 = vector.broadcast %cst : f32 to vector<64x128xf32>
    %c8_i32 = arith.constant 8 : i32
    %4 = arith.muli %arg1, %c8_i32 : i32
    %c0_i32_1 = arith.constant 0 : i32
    %5 = arith.addi %4, %c0_i32_1 : i32
    %c0 = arith.constant 0 : index
    %6 = arith.index_cast %5 : i32 to index
    %c0_2 = arith.constant 0 : index
    %c0_3 = arith.constant 0 : index
    %7 = vector.load %arg2[%c0, %6, %c0_2, %c0_3] : memref<1x9x9x12xbf16, #tpu.memory_space<vmem>>, vector<1x8x8x12xbf16>
    %8 = vector.shape_cast %7 : vector<1x8x8x12xbf16> to vector<8x8x12xbf16>
    %9 = vector.shape_cast %8 : vector<8x8x12xbf16> to vector<64x12xbf16>
    %c0_4 = arith.constant 0 : index
    %c0_5 = arith.constant 0 : index
    %c0_6 = arith.constant 0 : index
    %10 = vector.load %arg3[%c0_4, %c0_5, %c0_6] : memref<4x12x128xbf16, #tpu.memory_space<vmem>>, vector<1x12x128xbf16>
    %11 = vector.shape_cast %10 : vector<1x12x128xbf16> to vector<12x128xbf16>
    %cst_7 = arith.constant dense<0.000000e+00> : vector<64x128xf32>
    %12 = tpu.matmul %9, %11, %cst_7 {dimension_numbers = #tpu.dot_dimension_numbers<[1], [0], [0], [1], [0, 0, 1, 1], [], []>} : vector<64x12xbf16>, vector<12x128xbf16>, vector<64x128xf32> -> vector<64x128xf32>
    %13 = arith.addf %3, %12 : vector<64x128xf32>
    %c8_i32_8 = arith.constant 8 : i32
    %14 = arith.muli %arg1, %c8_i32_8 : i32
    %c0_i32_9 = arith.constant 0 : i32
    %15 = arith.addi %14, %c0_i32_9 : i32
    %c0_10 = arith.constant 0 : index
    %16 = arith.index_cast %15 : i32 to index
    %c1 = arith.constant 1 : index
    %c0_11 = arith.constant 0 : index
    %17 = vector.load %arg2[%c0_10, %16, %c1, %c0_11] : memref<1x9x9x12xbf16, #tpu.memory_space<vmem>>, vector<1x8x8x12xbf16>
    %18 = vector.shape_cast %17 : vector<1x8x8x12xbf16> to vector<8x8x12xbf16>
    %19 = vector.shape_cast %18 : vector<8x8x12xbf16> to vector<64x12xbf16>
    %c1_12 = arith.constant 1 : index
    %c0_13 = arith.constant 0 : index
    %c0_14 = arith.constant 0 : index
    %20 = vector.load %arg3[%c1_12, %c0_13, %c0_14] : memref<4x12x128xbf16, #tpu.memory_space<vmem>>, vector<1x12x128xbf16>
    %21 = vector.shape_cast %20 : vector<1x12x128xbf16> to vector<12x128xbf16>
    %cst_15 = arith.constant dense<0.000000e+00> : vector<64x128xf32>
    %22 = tpu.matmul %19, %21, %cst_15 {dimension_numbers = #tpu.dot_dimension_numbers<[1], [0], [0], [1], [0, 0, 1, 1], [], []>} : vector<64x12xbf16>, vector<12x128xbf16>, vector<64x128xf32> -> vector<64x128xf32>
    %23 = arith.addf %13, %22 : vector<64x128xf32>
    %c8_i32_16 = arith.constant 8 : i32
    %24 = arith.muli %arg1, %c8_i32_16 : i32
    %c1_i32 = arith.constant 1 : i32
    %25 = arith.addi %24, %c1_i32 : i32
    %c0_17 = arith.constant 0 : index
    %26 = arith.index_cast %25 : i32 to index
    %c0_18 = arith.constant 0 : index
    %c0_19 = arith.constant 0 : index
    %27 = vector.load %arg2[%c0_17, %26, %c0_18, %c0_19] : memref<1x9x9x12xbf16, #tpu.memory_space<vmem>>, vector<1x8x8x12xbf16>
    %28 = vector.shape_cast %27 : vector<1x8x8x12xbf16> to vector<8x8x12xbf16>
    %29 = vector.shape_cast %28 : vector<8x8x12xbf16> to vector<64x12xbf16>
    %c2 = arith.constant 2 : index
    %c0_20 = arith.constant 0 : index
    %c0_21 = arith.constant 0 : index
    %30 = vector.load %arg3[%c2, %c0_20, %c0_21] : memref<4x12x128xbf16, #tpu.memory_space<vmem>>, vector<1x12x128xbf16>
    %31 = vector.shape_cast %30 : vector<1x12x128xbf16> to vector<12x128xbf16>
    %cst_22 = arith.constant dense<0.000000e+00> : vector<64x128xf32>
    %32 = tpu.matmul %29, %31, %cst_22 {dimension_numbers = #tpu.dot_dimension_numbers<[1], [0], [0], [1], [0, 0, 1, 1], [], []>} : vector<64x12xbf16>, vector<12x128xbf16>, vector<64x128xf32> -> vector<64x128xf32>
    %33 = arith.addf %23, %32 : vector<64x128xf32>
    %c8_i32_23 = arith.constant 8 : i32
    %34 = arith.muli %arg1, %c8_i32_23 : i32
    %c1_i32_24 = arith.constant 1 : i32
    %35 = arith.addi %34, %c1_i32_24 : i32
    %c0_25 = arith.constant 0 : index
    %36 = arith.index_cast %35 : i32 to index
    %c1_26 = arith.constant 1 : index
    %c0_27 = arith.constant 0 : index
    %37 = vector.load %arg2[%c0_25, %36, %c1_26, %c0_27] : memref<1x9x9x12xbf16, #tpu.memory_space<vmem>>, vector<1x8x8x12xbf16>
    %38 = vector.shape_cast %37 : vector<1x8x8x12xbf16> to vector<8x8x12xbf16>
    %39 = vector.shape_cast %38 : vector<8x8x12xbf16> to vector<64x12xbf16>
    %c3 = arith.constant 3 : index
    %c0_28 = arith.constant 0 : index
    %c0_29 = arith.constant 0 : index
    %40 = vector.load %arg3[%c3, %c0_28, %c0_29] : memref<4x12x128xbf16, #tpu.memory_space<vmem>>, vector<1x12x128xbf16>
    %41 = vector.shape_cast %40 : vector<1x12x128xbf16> to vector<12x128xbf16>
    %cst_30 = arith.constant dense<0.000000e+00> : vector<64x128xf32>
    %42 = tpu.matmul %39, %41, %cst_30 {dimension_numbers = #tpu.dot_dimension_numbers<[1], [0], [0], [1], [0, 0, 1, 1], [], []>} : vector<64x12xbf16>, vector<12x128xbf16>, vector<64x128xf32> -> vector<64x128xf32>
    %43 = arith.addf %33, %42 : vector<64x128xf32>
    %c0_31 = arith.constant 0 : index
    %c0_32 = arith.constant 0 : index
    %44 = vector.load %arg4[%c0_31, %c0_32] : memref<1x128xf32, #tpu.memory_space<vmem>>, vector<1x128xf32>
    %45 = vector.broadcast %44 : vector<1x128xf32> to vector<64x128xf32>
    %46 = arith.addf %43, %45 : vector<64x128xf32>
    %47 = arith.negf %46 : vector<64x128xf32>
    %48 = math.exp %47 : vector<64x128xf32>
    %cst_33 = arith.constant 1.000000e+00 : f32
    %49 = vector.broadcast %cst_33 : f32 to vector<64x128xf32>
    %50 = arith.addf %49, %48 : vector<64x128xf32>
    %51 = arith.divf %49, %50 : vector<64x128xf32>
    %52 = arith.mulf %46, %51 : vector<64x128xf32>
    %c0_34 = arith.constant 0 : index
    %c0_35 = arith.constant 0 : index
    %53 = vector.load %arg8[%c0_34, %c0_35] : memref<1x128xf32, #tpu.memory_space<vmem>>, vector<1x128xf32>
    %cst_36 = arith.constant dense<0.000000e+00> : vector<128xf32>
    %54 = vector.multi_reduction <add>, %52, %cst_36 [0] : vector<64x128xf32> to vector<128xf32>
    %55 = vector.shape_cast %54 : vector<128xf32> to vector<1x128xf32>
    %56 = arith.addf %53, %55 : vector<1x128xf32>
    %c0_37 = arith.constant 0 : index
    %c0_38 = arith.constant 0 : index
    %57 = vector.load %arg8[%c0_37, %c0_38] : memref<1x128xf32, #tpu.memory_space<vmem>>, vector<1x128xf32>
    tpu.vector_store %arg8[%c0_37, %c0_38], %56 {strides = array<i32>} : memref<1x128xf32, #tpu.memory_space<vmem>>, vector<1x128xf32>,
    %c0_i32_39 = arith.constant 0 : i32
    %58 = arith.cmpi eq, %arg1, %c0_i32_39 : i32
    %59 = arith.extui %58 : i1 to i32
    %c0_i32_40 = arith.constant 0 : i32
    %60 = arith.cmpi ne, %59, %c0_i32_40 : i32
    scf.if %60 {
      %c0_41 = arith.constant 0 : index
      %c0_42 = arith.constant 0 : index
      %61 = vector.load %arg8[%c0_41, %c0_42] : memref<1x128xf32, #tpu.memory_space<vmem>>, vector<1x128xf32>
      %cst_43 = arith.constant 1.562500e-02 : f32
      %62 = vector.broadcast %cst_43 : f32 to vector<1x128xf32>
      %63 = arith.mulf %61, %62 : vector<1x128xf32>
      %c0_44 = arith.constant 0 : index
      %c0_45 = arith.constant 0 : index
      %64 = vector.load %arg5[%c0_44, %c0_45] : memref<1x128xf32, #tpu.memory_space<vmem>>, vector<1x128xf32>
      %65 = arith.mulf %63, %64 : vector<1x128xf32>
      %cst_46 = arith.constant dense<0.000000e+00> : vector<1xf32>
      %66 = vector.multi_reduction <add>, %65, %cst_46 [1] : vector<1x128xf32> to vector<1xf32>
      %67 = vector.shape_cast %66 : vector<1xf32> to vector<1x1xf32>
      %c0_47 = arith.constant 0 : index
      %c0_48 = arith.constant 0 : index
      %68 = vector.load %arg6[%c0_47, %c0_48] : memref<1x1xf32, #tpu.memory_space<vmem>>, vector<1x1xf32>
      %69 = arith.addf %67, %68 : vector<1x1xf32>
      %70 = vector.shape_cast %69 : vector<1x1xf32> to vector<1x1xf32>
      %71 = vector.broadcast %70 : vector<1x1xf32> to vector<8x128xf32>
      %c0_49 = arith.constant 0 : index
      %c0_50 = arith.constant 0 : index
      %c0_51 = arith.constant 0 : index
      %72 = vector.load %arg7[%c0_49, %c0_50, %c0_51] : memref<1x8x128xf32, #tpu.memory_space<vmem>>, vector<1x8x128xf32>
      %73 = vector.shape_cast %72 : vector<1x8x128xf32> to vector<8x128xf32>
      %74 = vector.shape_cast %71 : vector<8x128xf32> to vector<1x8x128xf32>
      tpu.vector_store %arg7[%c0_49, %c0_50, %c0_51], %74 {strides = array<i32>} : memref<1x8x128xf32, #tpu.memory_space<vmem>>, vector<1x8x128xf32>,
    } else {
    }
    return
  }
  func.func @transform_0(%arg0: i32, %arg1: i32) -> (i32, i32, i32, i32) {
    %c0_i32 = arith.constant 0 : i32
    %c0_i32_0 = arith.constant 0 : i32
    %c0_i32_1 = arith.constant 0 : i32
    %c0_i32_2 = arith.constant 0 : i32
    return %arg0, %c0_i32, %c0_i32_0, %c0_i32_1 : i32, i32, i32, i32
  }
  func.func @transform_1(%arg0: i32, %arg1: i32) -> (i32, i32, i32) {
    %c0_i32 = arith.constant 0 : i32
    %c0_i32_0 = arith.constant 0 : i32
    %c0_i32_1 = arith.constant 0 : i32
    %c0_i32_2 = arith.constant 0 : i32
    return %c0_i32, %c0_i32_0, %c0_i32_1 : i32, i32, i32
  }
  func.func @transform_2(%arg0: i32, %arg1: i32) -> (i32, i32) {
    %c0_i32 = arith.constant 0 : i32
    %c0_i32_0 = arith.constant 0 : i32
    %c0_i32_1 = arith.constant 0 : i32
    return %c0_i32, %c0_i32_0 : i32, i32
  }
  func.func @transform_3(%arg0: i32, %arg1: i32) -> (i32, i32) {
    %c0_i32 = arith.constant 0 : i32
    %c0_i32_0 = arith.constant 0 : i32
    %c0_i32_1 = arith.constant 0 : i32
    return %c0_i32, %c0_i32_0 : i32, i32
  }
  func.func @transform_4(%arg0: i32, %arg1: i32) -> (i32, i32) {
    %c0_i32 = arith.constant 0 : i32
    %c0_i32_0 = arith.constant 0 : i32
    %c0_i32_1 = arith.constant 0 : i32
    return %c0_i32, %c0_i32_0 : i32, i32
  }
  func.func @transform_5(%arg0: i32, %arg1: i32) -> (i32, i32, i32) {
    %c0_i32 = arith.constant 0 : i32
    %c0_i32_0 = arith.constant 0 : i32
    %c0_i32_1 = arith.constant 0 : i32
    return %arg0, %c0_i32, %c0_i32_0 : i32, i32, i32
  }
}

</mosaic_0001>

<llo_original>
// kernel: model_forward.1
$region0: #{model_forward.1}
  #allocation0 [shape = 'u32[]', space=smem, size = 0x4, offset = 0x4, fixed_abs, tag = 'smem constant byte address 0x4 - core index']
  #allocation1 [shape = 'u32[72,128]{1,0:T(1,128)}', space=vmem, size = 0x9000, scoped, tag = 'internal scratch']
  #allocation2 [shape = 'f32[1,128]{1,0:T(1,128)}', space=vmem, size = 0x200, scoped, tag = 'scratch operand']
  #allocation3 [shape = 'f32[1,1]{1,0:T(1,128)S(1)}', space=vmem, size = 0x200, scoped, tag = 'scoped memory for model_forward.1']
  %s0 = inlined_call_operand.vmem [shape: bf16[2,9,9,12], index: 0, kind: input, shape index: {}]
  %s1 = inlined_call_operand.vmem [shape: bf16[4,12,128], index: 1, kind: input, shape index: {}]
  %s2 = inlined_call_operand.vmem [shape: f32[1,128], index: 2, kind: input, shape index: {}]
  %s3 = inlined_call_operand.vmem [shape: f32[1,128], index: 3, kind: input, shape index: {}]
  %s4 = inlined_call_operand.<no memory space> [shape: f32[1,1], index: 4, kind: input, shape index: {}]
  %s5 = inlined_call_operand.vmem [shape: f32[2,8,128], index: 5, kind: output, shape index: {}]
  %s6 = sld [smem:[#allocation0]]
  $region61: #{model_forward.1} parent=0
    _
  %s8 = ssub.s32 1, %s6
  %s9 = scalar_select 0, %s8, %s6
  %v10 = vstv %s4
  %11 = vst [vmem:[#allocation3] sm:$0x1] %v10
  loop: start=0, step=1, limit=4
  $region2: #{model_forward.1} parent=0 // loop_pre_header
    _
  $region3: #{model_forward.1} parent=0 // loop_header
    %s13 = sphi 0, %s17
    %p14 = scmp.ge.s32.totalorder %s13, 4
    %s20 = sphi 0, %s32
    %s21 = sphi 0, %s28
    %s22 = sphi 0, %s20
    %s23 = sphi 0, %s21
    %s24 = sphi 0, %s22
    %s25 = sphi 0, %s23
    %s35 = sphi 0, %s37
    %s38 = sphi 0, %s35
    %s39 = sphi 0, %s38
    %s55 = sphi 0, %s39
    %s59 = sphi 0, %s59
    %s61 = sphi 0, %s59
    %s62 = sphi 0, %s61
    %s76 = sphi 0, %s62
    %s80 = sphi 0, %s80
    %s82 = sphi 0, %s80
    %s83 = sphi 0, %s82
    %s97 = sphi 0, %s83
    %s101 = sphi 0, %s101
    %s103 = sphi 0, %s101
    %s104 = sphi 0, %s103
    %s118 = sphi 0, %s104
    %s122 = sphi 0, %s122
    %s124 = sphi 0, %s122
    %s125 = sphi 0, %s124
    %s139 = sphi 0, %s125
    %s145 = sphi 0, %s147
    %s148 = sphi 0, %s145
    %s149 = sphi 0, %s148
    %s165 = sphi 0, %s149
  $region4: #{model_forward.1} parent=0 // loop_header_branch
    %16 = sbr.rel (%p14) target = $region8
  $region5: #{model_forward.1} parent=0 // loop_body
    %s18 = ssub.s32 %s13, 1
    %s19 = ssub.s32 %s13, 2
    %s26 = sadd.s32 1, %s21
    %p27 = scmp.ge.s32.totalorder %s26, 1
    %s28 = scalar_select %p27, 0, %s26
    %s29 = sadd.s32 1, %s20
    %s30 = scalar_select %p27, %s29, %s20
    %p31 = scmp.ge.s32.totalorder %s30, 2
    %s32 = scalar_select %p31, 0, %s30
    %s33 = ssub.s32 %s20, %s32
    %p34 = scmp.eq.s32.totalorder %s33, 0
    %s36 = sadd.s32 %s35, 1
    %s37 = scalar_select %p34, %s35, %s36
    %p40 = pneg %p34
    %p41 = scmp.eq.s32.totalorder %s13, 1
    %p42 = por %p40, %p41
    %p43 = scmp.ne.s32.totalorder %s35, %s38
    %p44 = scmp.eq.s32.totalorder %s13, 0
    %p45 = por %p43, %p44
    %p46 = scmp.ne.s32.totalorder %s35, %s38
    %p47 = scmp.eq.s32.totalorder %s18, 1
    %p48 = por %p46, %p47
    %p49 = scmp.ne.s32.totalorder %s38, %s39
    %p50 = scmp.eq.s32.totalorder %s18, 0
    %p51 = por %p49, %p50
    %p52 = scmp.ne.s32.totalorder %s38, %s39
    %p53 = scmp.eq.s32.totalorder %s19, 1
    %p54 = por %p52, %p53
    %p56 = scmp.ne.s32.totalorder %s39, %s55
    %p57 = scmp.eq.s32.totalorder %s19, 0
    %p58 = por %p56, %p57
    %s60 = sadd.s32 %s59, 1
    %p63 = scmp.eq.s32.totalorder %s13, 1
    %p64 = scmp.ne.s32.totalorder %s59, %s61
    %p65 = scmp.eq.s32.totalorder %s13, 0
    %p66 = por %p64, %p65
    %p67 = scmp.ne.s32.totalorder %s59, %s61
    %p68 = scmp.eq.s32.totalorder %s18, 1
    %p69 = por %p67, %p68
    %p70 = scmp.ne.s32.totalorder %s61, %s62
    %p71 = scmp.eq.s32.totalorder %s18, 0
    %p72 = por %p70, %p71
    %p73 = scmp.ne.s32.totalorder %s61, %s62
    %p74 = scmp.eq.s32.totalorder %s19, 1
    %p75 = por %p73, %p74
    %p77 = scmp.ne.s32.totalorder %s62, %s76
    %p78 = scmp.eq.s32.totalorder %s19, 0
    %p79 = por %p77, %p78
    %s81 = sadd.s32 %s80, 1
    %p84 = scmp.eq.s32.totalorder %s13, 1
    %p85 = scmp.ne.s32.totalorder %s80, %s82
    %p86 = scmp.eq.s32.totalorder %s13, 0
    %p87 = por %p85, %p86
    %p88 = scmp.ne.s32.totalorder %s80, %s82
    %p89 = scmp.eq.s32.totalorder %s18, 1
    %p90 = por %p88, %p89
    %p91 = scmp.ne.s32.totalorder %s82, %s83
    %p92 = scmp.eq.s32.totalorder %s18, 0
    %p93 = por %p91, %p92
    %p94 = scmp.ne.s32.totalorder %s82, %s83
    %p95 = scmp.eq.s32.totalorder %s19, 1
    %p96 = por %p94, %p95
    %p98 = scmp.ne.s32.totalorder %s83, %s97
    %p99 = scmp.eq.s32.totalorder %s19, 0
    %p100 = por %p98, %p99
    %s102 = sadd.s32 %s101, 1
    %p105 = scmp.eq.s32.totalorder %s13, 1
    %p106 = scmp.ne.s32.totalorder %s101, %s103
    %p107 = scmp.eq.s32.totalorder %s13, 0
    %p108 = por %p106, %p107
    %p109 = scmp.ne.s32.totalorder %s101, %s103
    %p110 = scmp.eq.s32.totalorder %s18, 1
    %p111 = por %p109, %p110
    %p112 = scmp.ne.s32.totalorder %s103, %s104
    %p113 = scmp.eq.s32.totalorder %s18, 0
    %p114 = por %p112, %p113
    %p115 = scmp.ne.s32.totalorder %s103, %s104
    %p116 = scmp.eq.s32.totalorder %s19, 1
    %p117 = por %p115, %p116
    %p119 = scmp.ne.s32.totalorder %s104, %s118
    %p120 = scmp.eq.s32.totalorder %s19, 0
    %p121 = por %p119, %p120
    %s123 = sadd.s32 %s122, 1
    %p126 = scmp.eq.s32.totalorder %s13, 1
    %p127 = scmp.ne.s32.totalorder %s122, %s124
    %p128 = scmp.eq.s32.totalorder %s13, 0
    %p129 = por %p127, %p128
    %p130 = scmp.ne.s32.totalorder %s122, %s124
    %p131 = scmp.eq.s32.totalorder %s18, 1
    %p132 = por %p130, %p131
    %p133 = scmp.ne.s32.totalorder %s124, %s125
    %p134 = scmp.eq.s32.totalorder %s18, 0
    %p135 = por %p133, %p134
    %p136 = scmp.ne.s32.totalorder %s124, %s125
    %p137 = scmp.eq.s32.totalorder %s19, 1
    %p138 = por %p136, %p137
    %p140 = scmp.ne.s32.totalorder %s125, %s139
    %p141 = scmp.eq.s32.totalorder %s19, 0
    %p142 = por %p140, %p141
    %s143 = ssub.s32 %s20, %s32
    %p144 = scmp.eq.s32.totalorder %s143, 0
    %s146 = sadd.s32 %s145, 1
    %s147 = scalar_select %p144, %s145, %s146
    %p150 = pneg %p144
    %p151 = scmp.eq.s32.totalorder %s13, 1
    %p152 = por %p150, %p151
    %p153 = scmp.ne.s32.totalorder %s145, %s148
    %p154 = scmp.eq.s32.totalorder %s13, 0
    %p155 = por %p153, %p154
    %p156 = scmp.ne.s32.totalorder %s145, %s148
    %p157 = scmp.eq.s32.totalorder %s18, 1
    %p158 = por %p156, %p157
    %p159 = scmp.ne.s32.totalorder %s148, %s149
    %p160 = scmp.eq.s32.totalorder %s18, 0
    %p161 = por %p159, %p160
    %p162 = scmp.ne.s32.totalorder %s148, %s149
    %p163 = scmp.eq.s32.totalorder %s19, 1
    %p164 = por %p162, %p163
    %p166 = scmp.ne.s32.totalorder %s149, %s165
    %p167 = scmp.eq.s32.totalorder %s19, 0
    %p168 = por %p166, %p167
    %p169 = scmp.le.s32.totalorder 1, %s13
    %p170 = scmp.lt.s32.totalorder %s13, 3
    %p171 = pnand %p169, %p170
    %p172 = pneg %p171
    // Predicated region
    $region9: #{model_forward.1} parent=5 // pred_check
      _
    $region10: #{model_forward.1} parent=5 // pred_check_branch
      %174 = sbr.rel (%p171) target = $region12
    $region11: #{model_forward.1} parent=5 // pred_region
      %s175 = ssub.s32 %s13, 1
      // Predicated region
      $region13: #{model_forward.1} parent=11 // pred_check
        %p176 = pneg %p72
      $region14: #{model_forward.1} parent=11 // pred_check_branch
        %178 = sbr.rel (%p176) target = $region16
      $region15: #{model_forward.1} parent=11 // pred_region
        _
      $region16: #{model_forward.1} parent=11 // pred_fallthru
        _
      // Predicated region
      $region17: #{model_forward.1} parent=11 // pred_check
        %p179 = pneg %p93
      $region18: #{model_forward.1} parent=11 // pred_check_branch
        %181 = sbr.rel (%p179) target = $region20
      $region19: #{model_forward.1} parent=11 // pred_region
        _
      $region20: #{model_forward.1} parent=11 // pred_fallthru
        _
      // Predicated region
      $region21: #{model_forward.1} parent=11 // pred_check
        %p182 = pneg %p114
      $region22: #{model_forward.1} parent=11 // pred_check_branch
        %184 = sbr.rel (%p182) target = $region24
      $region23: #{model_forward.1} parent=11 // pred_region
        _
      $region24: #{model_forward.1} parent=11 // pred_fallthru
        _
      // Predicated region
      $region25: #{model_forward.1} parent=11 // pred_check
        %p185 = pneg %p135
      $region26: #{model_forward.1} parent=11 // pred_check_branch
        %187 = sbr.rel (%p185) target = $region28
      $region27: #{model_forward.1} parent=11 // pred_region
        _
      $region28: #{model_forward.1} parent=11 // pred_fallthru
        _
    $region12: #{model_forward.1} parent=5 // pred_fallthru
      _
    %p188 = scmp.lt.s32.totalorder %s13, 2
    // Predicated region
    $region29: #{model_forward.1} parent=5 // pred_check
      %p189 = pneg %p188
    $region30: #{model_forward.1} parent=5 // pred_check_branch
      %191 = sbr.rel (%p189) target = $region32
    $region31: #{model_forward.1} parent=5 // pred_region
      // Predicated region
      $region33: #{model_forward.1} parent=31 // pred_check
        %p192 = pneg %p45
      $region34: #{model_forward.1} parent=31 // pred_check_branch
        %194 = sbr.rel (%p192) target = $region36
      $region35: #{model_forward.1} parent=31 // pred_region
        %p195 = scmp.lt.s32.totalorder %s20, 1
        %s196 = scalar_select %p195, %s20, 1
        %s197 = smul.addr %s196, 18
        %s198 = smul.addr %s197, 4
        %s199 = scalar_lea.vmem %s0, %s198
      $region36: #{model_forward.1} parent=31 // pred_fallthru
        _
    $region32: #{model_forward.1} parent=5 // pred_fallthru
      _
    %p200 = scmp.le.s32.totalorder 1, %s13
    %p201 = scmp.lt.s32.totalorder %s13, 3
    %p202 = pnand %p200, %p201
    %p203 = pneg %p202
    // Predicated region
    $region37: #{model_forward.1} parent=5 // pred_check
      _
    $region38: #{model_forward.1} parent=5 // pred_check_branch
      %205 = sbr.rel (%p202) target = $region40
    $region39: #{model_forward.1} parent=5 // pred_region
      %s206 = ssub.s32 %s13, 1
      %p207 = scmp.lt.s32.totalorder %s22, 1
      %s208 = scalar_select %p207, %s22, 1
      %s209 = smul.addr %s208, 18
      %s210 = smul.addr %s209, 4
      %s211 = scalar_lea.vmem %s0, %s210
      %p212 = pneg %p51
      %p213 = pneg %p48
      %p214 = pneg %p72
      %p215 = pneg %p69
      %p216 = pneg %p93
      %p217 = pneg %p90
      %p218 = pneg %p114
      %p219 = pneg %p111
      %p220 = pneg %p135
      %p221 = pneg %p132
      %p222 = pneg %p161
      %p223 = pneg %p158
      %p224 = scmp.lt.s32.totalorder %s22, 1
      %s225 = scalar_select %p224, %s22, 1
      %s226 = smul.addr %s225, 8
      %s227 = scalar_lea.vmem %s5, %s226
      %p228 = scmp.lt.s32.totalorder %s22, 1
      %s229 = scalar_select %p228, %s22, 1
      %s230 = smul.addr %s229, 18
      %s231 = smul.addr %s230, 4
      %s232 = scalar_lea.vmem %s0, %s231
      %p233 = scmp.lt.s32.totalorder %s22, 1
      %s234 = scalar_select %p233, %s22, 1
      %s235 = smul.addr %s234, 8
      %s236 = scalar_lea.vmem %s5, %s235
      %p238 = scmp.eq.s32.totalorder %s23, 0
      // Predicated region
      $region41: #{model_forward.1} parent=39 // pred_check
        %p239 = pneg %p238
      $region42: #{model_forward.1} parent=39 // pred_check_branch
        %241 = sbr.rel (%p239) target = $region44
      $region43: #{model_forward.1} parent=39 // pred_region
        %242 = vst [vmem:[#allocation2] sm:$0x1] 0.0
      $region44: #{model_forward.1} parent=39 // pred_fallthru
        _
      %s243 = smul.u32 %s23, 8
      %s244 = smul.u32 %s243, 2
      %s245 = smul.addr %s244, 4
      %s246 = scalar_lea.vmem %s232, %s245
      %v247 = vld [vmem:[%s246] sm:$0xf]
      %v248 = vld [vmem:[%s246 + $0x8] sm:$0xf]
      %v249 = vld [vmem:[%s246 + $0x10] sm:$0xf]
      %v250 = vld [vmem:[%s246 + $0x18] sm:$0xf]
      %v251 = vld [vmem:[%s246 + $0x20] sm:$0xf]
      %v252 = vld [vmem:[%s246 + $0x28] sm:$0xf]
      %v253 = vld [vmem:[%s246 + $0x30] sm:$0xf]
      %v254 = vld [vmem:[%s246 + $0x38] sm:$0xf]
      %v255 = vld [vmem:[%s1] sm:$0xf]
      %v256 = vld [vmem:[%s1 + $0x4] sm:$0x3]
      %v257 = vld [vmem:[%s246 + $0x4] sm:$0x1]
      %v258 = vld [vmem:[%s246 + $0xc] sm:$0x1]
      %v259 = vld [vmem:[%s246 + $0x14] sm:$0x1]
      %v260 = vld [vmem:[%s246 + $0x1c] sm:$0x1]
      %v261 = vld [vmem:[%s246 + $0x24] sm:$0x1]
      %v262 = vld [vmem:[%s246 + $0x2c] sm:$0x1]
      %v263 = vld [vmem:[%s246 + $0x34] sm:$0x1]
      %v264 = vld [vmem:[%s246 + $0x3c] sm:$0x1]
      %vm265 = vsmask.f32 3328
      %vm266 = vsmask.f32 7440
      %vm267 = vmor %vm265, %vm266
      %v269 = vshrl.u32 %v247, 16
      %v271 = vrot.slane %v269, 4
      %v272 = vshll.u32 %v247, 16
      %v274 = vrot.slane %v272, 5
      %v275 = vor.u32 %v271, %v274
      %v276 = vrot.slane %v275, 4
      %v278 = vshll.u32 %v257, 16
      %v280 = vrot.slane %v278, 5
      %v281 = vsel %vm267, %v276, %v280
      %v283 = vshrl.u32 %v248, 16
      %v285 = vrot.slane %v283, 4
      %v286 = vshll.u32 %v248, 16
      %v288 = vrot.slane %v286, 5
      %v289 = vor.u32 %v285, %v288
      %v290 = vrot.slane %v289, 4
      %v292 = vshll.u32 %v258, 16
      %v294 = vrot.slane %v292, 5
      %v295 = vsel %vm267, %v290, %v294
      %v297 = vshrl.u32 %v249, 16
      %v299 = vrot.slane %v297, 4
      %v300 = vshll.u32 %v249, 16
      %v302 = vrot.slane %v300, 5
      %v303 = vor.u32 %v299, %v302
      %v304 = vrot.slane %v303, 4
      %v306 = vshll.u32 %v259, 16
      %v308 = vrot.slane %v306, 5
      %v309 = vsel %vm267, %v304, %v308
      %v311 = vshrl.u32 %v250, 16
      %v313 = vrot.slane %v311, 4
      %v314 = vshll.u32 %v250, 16
      %v316 = vrot.slane %v314, 5
      %v317 = vor.u32 %v313, %v316
      %v318 = vrot.slane %v317, 4
      %v320 = vshll.u32 %v260, 16
      %v322 = vrot.slane %v320, 5
      %v323 = vsel %vm267, %v318, %v322
      %v325 = vshrl.u32 %v251, 16
      %v327 = vrot.slane %v325, 4
      %v328 = vshll.u32 %v251, 16
      %v330 = vrot.slane %v328, 5
      %v331 = vor.u32 %v327, %v330
      %v332 = vrot.slane %v331, 4
      %v334 = vshll.u32 %v261, 16
      %v336 = vrot.slane %v334, 5
      %v337 = vsel %vm267, %v332, %v336
      %v339 = vshrl.u32 %v252, 16
      %v341 = vrot.slane %v339, 4
      %v342 = vshll.u32 %v252, 16
      %v344 = vrot.slane %v342, 5
      %v345 = vor.u32 %v341, %v344
      %v346 = vrot.slane %v345, 4
      %v348 = vshll.u32 %v262, 16
      %v350 = vrot.slane %v348, 5
      %v351 = vsel %vm267, %v346, %v350
      %v353 = vshrl.u32 %v253, 16
      %v355 = vrot.slane %v353, 4
      %v356 = vshll.u32 %v253, 16
      %v358 = vrot.slane %v356, 5
      %v359 = vor.u32 %v355, %v358
      %v360 = vrot.slane %v359, 4
      %v362 = vshll.u32 %v263, 16
      %v364 = vrot.slane %v362, 5
      %v365 = vsel %vm267, %v360, %v364
      %v367 = vshrl.u32 %v254, 16
      %v369 = vrot.slane %v367, 4
      %v370 = vshll.u32 %v254, 16
      %v372 = vrot.slane %v370, 5
      %v373 = vor.u32 %v369, %v372
      %v374 = vrot.slane %v373, 4
      %v376 = vshll.u32 %v264, 16
      %v378 = vrot.slane %v376, 5
      %v379 = vsel %vm267, %v374, %v378
      %s380 = scalar_lea.vmem %s1, 8
      %v381 = vld [vmem:[%s380] sm:$0xf]
      %v382 = vld [vmem:[%s380 + $0x4] sm:$0x3]
      %v383 = vunpack.c.l.b16 %v281
      %v384 = vunpack.c.l.b16 %v295
      %v385 = vunpack.c.l.b16 %v309
      %v386 = vunpack.c.l.b16 %v323
      %v387 = vunpack.c.l.b16 %v337
      %v388 = vunpack.c.l.b16 %v351
      %v389 = vunpack.c.l.b16 %v365
      %v390 = vunpack.c.l.b16 %v379
      %v391 = vpack.c.b16 %v384, %v383
      %v392 = vpack.c.b16 %v386, %v385
      %v393 = vpack.c.b16 %v388, %v387
      %v394 = vpack.c.b16 %v390, %v389
      %v397 = vunpack.c.l.b16 %v381
      %v398 = vunpack.c.l.b16 %v382
      %v399 = vpack.c.b16 %v398, %v397
      %vm400 = vcmask 97280
      %v402 = vsel %vm400, %v391, 0
      %v405 = vsel %vm400, %v392, 0
      %v408 = vsel %vm400, %v393, 0
      %v411 = vsel %vm400, %v394, 0
      %vm413 = vcmask 1045504
      %v415 = vsel %vm413, %v399, 0
      %417 = vmatpush.bf16.msra.mxu0 0
      %418 = vmatpush.bf16.msra.mxu0 0
      %419 = vmatpush.bf16.msra.mxu0 0
      %420 = vmatpush.bf16.msra.mxu0 0
      %421 = vmatpush.bf16.msra.mxu0 0
      %422 = vmatpush.bf16.msra.mxu0 0
      %423 = vmatpush.bf16.msra.mxu0 0
      %424 = vmatpush.bf16.msra.mxu0 %v415
      %425 = vmatmul.bf16.gmra.mxu0 %v402
      %v426 = vpop.f32.mrf.mxu0
      %v427 = vadd.f32 0.0, %v426
      %v428 = vpop.f32.mrf.mxu0
      %v429 = vadd.f32 0.0, %v428
      %430 = vmatmul.bf16.gmra.mxu0 %v405
      %v431 = vpop.f32.mrf.mxu0
      %v432 = vadd.f32 0.0, %v431
      %v433 = vpop.f32.mrf.mxu0
      %v434 = vadd.f32 0.0, %v433
      %435 = vmatmul.bf16.gmra.mxu0 %v408
      %v436 = vpop.f32.mrf.mxu0
      %v437 = vadd.f32 0.0, %v436
      %v438 = vpop.f32.mrf.mxu0
      %v439 = vadd.f32 0.0, %v438
      %440 = vmatmul.bf16.gmra.mxu0 %v411
      %v441 = vpop.f32.mrf.mxu0
      %v442 = vadd.f32 0.0, %v441
      %v443 = vpop.f32.mrf.mxu0
      %v444 = vadd.f32 0.0, %v443
      %445 = vdwg.mxu0
      %v454 = vunpack.c.l.b16 %v247
      %v455 = vunpack.c.l.b16 %v248
      %v456 = vunpack.c.l.b16 %v249
      %v457 = vunpack.c.l.b16 %v250
      %v458 = vunpack.c.l.b16 %v251
      %v459 = vunpack.c.l.b16 %v252
      %v460 = vunpack.c.l.b16 %v253
      %v461 = vunpack.c.l.b16 %v254
      %v462 = vpack.c.b16 %v455, %v454
      %v463 = vpack.c.b16 %v457, %v456
      %v464 = vpack.c.b16 %v459, %v458
      %v465 = vpack.c.b16 %v461, %v460
      %v468 = vunpack.c.l.b16 %v255
      %v469 = vunpack.c.l.b16 %v256
      %v470 = vpack.c.b16 %v469, %v468
      %v472 = vsel %vm400, %v462, 0
      %v475 = vsel %vm400, %v463, 0
      %v478 = vsel %vm400, %v464, 0
      %v481 = vsel %vm400, %v465, 0
      %v484 = vsel %vm413, %v470, 0
      %486 = vmatpush.bf16.msra.mxu0 0
      %487 = vmatpush.bf16.msra.mxu0 0
      %488 = vmatpush.bf16.msra.mxu0 0
      %489 = vmatpush.bf16.msra.mxu0 0
      %490 = vmatpush.bf16.msra.mxu0 0
      %491 = vmatpush.bf16.msra.mxu0 0
      %492 = vmatpush.bf16.msra.mxu0 0
      %493 = vmatpush.bf16.msra.mxu0 %v484
      %494 = vmatmul.bf16.gmra.mxu0 %v472
      %v495 = vpop.f32.mrf.mxu0
      %v496 = vadd.f32 %v427, %v495
      %v497 = vpop.f32.mrf.mxu0
      %v498 = vadd.f32 %v429, %v497
      %499 = vmatmul.bf16.gmra.mxu0 %v475
      %v500 = vpop.f32.mrf.mxu0
      %v501 = vadd.f32 %v432, %v500
      %v502 = vpop.f32.mrf.mxu0
      %v503 = vadd.f32 %v434, %v502
      %504 = vmatmul.bf16.gmra.mxu0 %v478
      %v505 = vpop.f32.mrf.mxu0
      %v506 = vadd.f32 %v437, %v505
      %v507 = vpop.f32.mrf.mxu0
      %v508 = vadd.f32 %v439, %v507
      %509 = vmatmul.bf16.gmra.mxu0 %v481
      %v510 = vpop.f32.mrf.mxu0
      %v511 = vadd.f32 %v442, %v510
      %v512 = vpop.f32.mrf.mxu0
      %v513 = vadd.f32 %v444, %v512
      %514 = vdwg.mxu0
      %s515 = sadd.s32 %s243, 1
      %s516 = smul.u32 %s515, 2
      %s517 = smul.addr %s516, 4
      %s518 = scalar_lea.vmem %s232, %s517
      %v519 = vld [vmem:[%s518] sm:$0xf]
      %v520 = vld [vmem:[%s518 + $0x8] sm:$0xf]
      %v521 = vld [vmem:[%s518 + $0x10] sm:$0xf]
      %v522 = vld [vmem:[%s518 + $0x18] sm:$0xf]
      %v523 = vld [vmem:[%s518 + $0x20] sm:$0xf]
      %v524 = vld [vmem:[%s518 + $0x28] sm:$0xf]
      %v525 = vld [vmem:[%s518 + $0x30] sm:$0xf]
      %v526 = vld [vmem:[%s518 + $0x38] sm:$0xf]
      %s527 = scalar_lea.vmem %s1, 16
      %v528 = vld [vmem:[%s527] sm:$0xf]
      %v529 = vld [vmem:[%s527 + $0x4] sm:$0x3]
      %v538 = vunpack.c.l.b16 %v519
      %v539 = vunpack.c.l.b16 %v520
      %v540 = vunpack.c.l.b16 %v521
      %v541 = vunpack.c.l.b16 %v522
      %v542 = vunpack.c.l.b16 %v523
      %v543 = vunpack.c.l.b16 %v524
      %v544 = vunpack.c.l.b16 %v525
      %v545 = vunpack.c.l.b16 %v526
      %v546 = vpack.c.b16 %v539, %v538
      %v547 = vpack.c.b16 %v541, %v540
      %v548 = vpack.c.b16 %v543, %v542
      %v549 = vpack.c.b16 %v545, %v544
      %v552 = vunpack.c.l.b16 %v528
      %v553 = vunpack.c.l.b16 %v529
      %v554 = vpack.c.b16 %v553, %v552
      %v556 = vsel %vm400, %v546, 0
      %v559 = vsel %vm400, %v547, 0
      %v562 = vsel %vm400, %v548, 0
      %v565 = vsel %vm400, %v549, 0
      %v568 = vsel %vm413, %v554, 0
      %570 = vmatpush.bf16.msra.mxu0 0
      %571 = vmatpush.bf16.msra.mxu0 0
      %572 = vmatpush.bf16.msra.mxu0 0
      %573 = vmatpush.bf16.msra.mxu0 0
      %574 = vmatpush.bf16.msra.mxu0 0
      %575 = vmatpush.bf16.msra.mxu0 0
      %576 = vmatpush.bf16.msra.mxu0 0
      %577 = vmatpush.bf16.msra.mxu0 %v568
      %578 = vmatmul.bf16.gmra.mxu0 %v556
      %v579 = vpop.f32.mrf.mxu0
      %v580 = vadd.f32 0.0, %v579
      %v581 = vpop.f32.mrf.mxu0
      %v582 = vadd.f32 0.0, %v581
      %583 = vmatmul.bf16.gmra.mxu0 %v559
      %v584 = vpop.f32.mrf.mxu0
      %v585 = vadd.f32 0.0, %v584
      %v586 = vpop.f32.mrf.mxu0
      %v587 = vadd.f32 0.0, %v586
      %588 = vmatmul.bf16.gmra.mxu0 %v562
      %v589 = vpop.f32.mrf.mxu0
      %v590 = vadd.f32 0.0, %v589
      %v591 = vpop.f32.mrf.mxu0
      %v592 = vadd.f32 0.0, %v591
      %593 = vmatmul.bf16.gmra.mxu0 %v565
      %v594 = vpop.f32.mrf.mxu0
      %v595 = vadd.f32 0.0, %v594
      %v596 = vpop.f32.mrf.mxu0
      %v597 = vadd.f32 0.0, %v596
      %598 = vdwg.mxu0
      %v599 = vadd.f32 %v496, %v580
      %v600 = vadd.f32 %v498, %v582
      %v601 = vadd.f32 %v501, %v585
      %v602 = vadd.f32 %v503, %v587
      %v603 = vadd.f32 %v506, %v590
      %v604 = vadd.f32 %v508, %v592
      %v605 = vadd.f32 %v511, %v595
      %v606 = vadd.f32 %v513, %v597
      %v607 = vld [vmem:[%s518] sm:$0xf]
      %v608 = vld [vmem:[%s518 + $0x4] sm:$0x1]
      %v609 = vld [vmem:[%s518 + $0x8] sm:$0xf]
      %v610 = vld [vmem:[%s518 + $0xc] sm:$0x1]
      %v611 = vld [vmem:[%s518 + $0x10] sm:$0xf]
      %v612 = vld [vmem:[%s518 + $0x14] sm:$0x1]
      %v613 = vld [vmem:[%s518 + $0x18] sm:$0xf]
      %v614 = vld [vmem:[%s518 + $0x1c] sm:$0x1]
      %v615 = vld [vmem:[%s518 + $0x20] sm:$0xf]
      %v616 = vld [vmem:[%s518 + $0x24] sm:$0x1]
      %v617 = vld [vmem:[%s518 + $0x28] sm:$0xf]
      %v618 = vld [vmem:[%s518 + $0x2c] sm:$0x1]
      %v619 = vld [vmem:[%s518 + $0x30] sm:$0xf]
      %v620 = vld [vmem:[%s518 + $0x34] sm:$0x1]
      %v621 = vld [vmem:[%s518 + $0x38] sm:$0xf]
      %v622 = vld [vmem:[%s518 + $0x3c] sm:$0x1]
      %v624 = vshrl.u32 %v607, 16
      %v626 = vrot.slane %v624, 4
      %v627 = vshll.u32 %v607, 16
      %v629 = vrot.slane %v627, 5
      %v630 = vor.u32 %v626, %v629
      %v631 = vrot.slane %v630, 4
      %v633 = vshll.u32 %v608, 16
      %v635 = vrot.slane %v633, 5
      %v636 = vsel %vm267, %v631, %v635
      %v638 = vshrl.u32 %v609, 16
      %v640 = vrot.slane %v638, 4
      %v641 = vshll.u32 %v609, 16
      %v643 = vrot.slane %v641, 5
      %v644 = vor.u32 %v640, %v643
      %v645 = vrot.slane %v644, 4
      %v647 = vshll.u32 %v610, 16
      %v649 = vrot.slane %v647, 5
      %v650 = vsel %vm267, %v645, %v649
      %v652 = vshrl.u32 %v611, 16
      %v654 = vrot.slane %v652, 4
      %v655 = vshll.u32 %v611, 16
      %v657 = vrot.slane %v655, 5
      %v658 = vor.u32 %v654, %v657
      %v659 = vrot.slane %v658, 4
      %v661 = vshll.u32 %v612, 16
      %v663 = vrot.slane %v661, 5
      %v664 = vsel %vm267, %v659, %v663
      %v666 = vshrl.u32 %v613, 16
      %v668 = vrot.slane %v666, 4
      %v669 = vshll.u32 %v613, 16
      %v671 = vrot.slane %v669, 5
      %v672 = vor.u32 %v668, %v671
      %v673 = vrot.slane %v672, 4
      %v675 = vshll.u32 %v614, 16
      %v677 = vrot.slane %v675, 5
      %v678 = vsel %vm267, %v673, %v677
      %v680 = vshrl.u32 %v615, 16
      %v682 = vrot.slane %v680, 4
      %v683 = vshll.u32 %v615, 16
      %v685 = vrot.slane %v683, 5
      %v686 = vor.u32 %v682, %v685
      %v687 = vrot.slane %v686, 4
      %v689 = vshll.u32 %v616, 16
      %v691 = vrot.slane %v689, 5
      %v692 = vsel %vm267, %v687, %v691
      %v694 = vshrl.u32 %v617, 16
      %v696 = vrot.slane %v694, 4
      %v697 = vshll.u32 %v617, 16
      %v699 = vrot.slane %v697, 5
      %v700 = vor.u32 %v696, %v699
      %v701 = vrot.slane %v700, 4
      %v703 = vshll.u32 %v618, 16
      %v705 = vrot.slane %v703, 5
      %v706 = vsel %vm267, %v701, %v705
      %v708 = vshrl.u32 %v619, 16
      %v710 = vrot.slane %v708, 4
      %v711 = vshll.u32 %v619, 16
      %v713 = vrot.slane %v711, 5
      %v714 = vor.u32 %v710, %v713
      %v715 = vrot.slane %v714, 4
      %v717 = vshll.u32 %v620, 16
      %v719 = vrot.slane %v717, 5
      %v720 = vsel %vm267, %v715, %v719
      %v722 = vshrl.u32 %v621, 16
      %v724 = vrot.slane %v722, 4
      %v725 = vshll.u32 %v621, 16
      %v727 = vrot.slane %v725, 5
      %v728 = vor.u32 %v724, %v727
      %v729 = vrot.slane %v728, 4
      %v731 = vshll.u32 %v622, 16
      %v733 = vrot.slane %v731, 5
      %v734 = vsel %vm267, %v729, %v733
      %s735 = scalar_lea.vmem %s1, 24
      %v736 = vld [vmem:[%s735] sm:$0xf]
      %v737 = vld [vmem:[%s735 + $0x4] sm:$0x3]
      %v738 = vunpack.c.l.b16 %v636
      %v739 = vunpack.c.l.b16 %v650
      %v740 = vunpack.c.l.b16 %v664
      %v741 = vunpack.c.l.b16 %v678
      %v742 = vunpack.c.l.b16 %v692
      %v743 = vunpack.c.l.b16 %v706
      %v744 = vunpack.c.l.b16 %v720
      %v745 = vunpack.c.l.b16 %v734
      %v746 = vpack.c.b16 %v739, %v738
      %v747 = vpack.c.b16 %v741, %v740
      %v748 = vpack.c.b16 %v743, %v742
      %v749 = vpack.c.b16 %v745, %v744
      %v752 = vunpack.c.l.b16 %v736
      %v753 = vunpack.c.l.b16 %v737
      %v754 = vpack.c.b16 %v753, %v752
      %v756 = vsel %vm400, %v746, 0
      %v759 = vsel %vm400, %v747, 0
      %v762 = vsel %vm400, %v748, 0
      %v765 = vsel %vm400, %v749, 0
      %v768 = vsel %vm413, %v754, 0
      %770 = vmatpush.bf16.msra.mxu0 0
      %771 = vmatpush.bf16.msra.mxu0 0
      %772 = vmatpush.bf16.msra.mxu0 0
      %773 = vmatpush.bf16.msra.mxu0 0
      %774 = vmatpush.bf16.msra.mxu0 0
      %775 = vmatpush.bf16.msra.mxu0 0
      %776 = vmatpush.bf16.msra.mxu0 0
      %777 = vmatpush.bf16.msra.mxu0 %v768
      %778 = vmatmul.bf16.gmra.mxu0 %v756
      %v779 = vpop.f32.mrf.mxu0
      %v780 = vadd.f32 0.0, %v779
      %v781 = vpop.f32.mrf.mxu0
      %v782 = vadd.f32 0.0, %v781
      %783 = vmatmul.bf16.gmra.mxu0 %v759
      %v784 = vpop.f32.mrf.mxu0
      %v785 = vadd.f32 0.0, %v784
      %v786 = vpop.f32.mrf.mxu0
      %v787 = vadd.f32 0.0, %v786
      %788 = vmatmul.bf16.gmra.mxu0 %v762
      %v789 = vpop.f32.mrf.mxu0
      %v790 = vadd.f32 0.0, %v789
      %v791 = vpop.f32.mrf.mxu0
      %v792 = vadd.f32 0.0, %v791
      %793 = vmatmul.bf16.gmra.mxu0 %v765
      %v794 = vpop.f32.mrf.mxu0
      %v795 = vadd.f32 0.0, %v794
      %v796 = vpop.f32.mrf.mxu0
      %v797 = vadd.f32 0.0, %v796
      %798 = vdwg.mxu0
      %v799 = vadd.f32 %v599, %v780
      %v800 = vadd.f32 %v600, %v782
      %v801 = vadd.f32 %v601, %v785
      %v802 = vadd.f32 %v602, %v787
      %v803 = vadd.f32 %v603, %v790
      %v804 = vadd.f32 %v604, %v792
      %v805 = vadd.f32 %v605, %v795
      %v806 = vadd.f32 %v606, %v797
      %v807 = vld [vmem:[%s2] sm:$0x1]
      %v809 = vperm.slane %v807, 0
      %v811 = vadd.f32 %v799, %v809
      %v812 = vadd.f32 %v800, %v809
      %v813 = vadd.f32 %v801, %v809
      %v814 = vadd.f32 %v802, %v809
      %v815 = vadd.f32 %v803, %v809
      %v816 = vadd.f32 %v804, %v809
      %v817 = vadd.f32 %v805, %v809
      %v818 = vadd.f32 %v806, %v809
      %v819 = vxor.u32 %v811, 2147483648
      %v820 = vxor.u32 %v812, 2147483648
      %v821 = vxor.u32 %v813, 2147483648
      %v822 = vxor.u32 %v814, 2147483648
      %v823 = vxor.u32 %v815, 2147483648
      %v824 = vxor.u32 %v816, 2147483648
      %v825 = vxor.u32 %v817, 2147483648
      %v826 = vxor.u32 %v818, 2147483648
      %v827 = vmul.f32 %v819, 1.442695
      %v828 = vpow.pop %v827
      %v829 = vmul.f32 %v820, 1.442695
      %v830 = vpow.pop %v829
      %v831 = vmul.f32 %v821, 1.442695
      %v832 = vpow.pop %v831
      %v833 = vmul.f32 %v822, 1.442695
      %v834 = vpow.pop %v833
      %v835 = vmul.f32 %v823, 1.442695
      %v836 = vpow.pop %v835
      %v837 = vmul.f32 %v824, 1.442695
      %v838 = vpow.pop %v837
      %v839 = vmul.f32 %v825, 1.442695
      %v840 = vpow.pop %v839
      %v841 = vmul.f32 %v826, 1.442695
      %v842 = vpow.pop %v841
      %v843 = vadd.f32 %v828, 1.0
      %v844 = vadd.f32 %v830, 1.0
      %v845 = vadd.f32 %v832, 1.0
      %v846 = vadd.f32 %v834, 1.0
      %v847 = vadd.f32 %v836, 1.0
      %v848 = vadd.f32 %v838, 1.0
      %v849 = vadd.f32 %v840, 1.0
      %v850 = vadd.f32 %v842, 1.0
      %v851 = vrcp.pop %v843
      %v852 = vmul.f32 %v843, %v851
      %v853 = vsub.f32 1.0, %v852
      %v854 = vmul.f32 %v851, %v853
      %v855 = vadd.f32 %v851, %v854
      %vm856 = vweird.f32 %v843
      %vm857 = vweird.f32 %v851
      %vm858 = vmor %vm856, %vm857
      %v859 = vsel %vm858, %v851, %v855
      %v860 = vand.u32 2147483647, %v843
      %vm861 = vcmp.eq.f32.partialorder %v860, 8.507059e+37
      %v862 = vand.u32 %v843, 2147483648
      %v863 = vor.u32 1.1754944e-38, %v862
      %v864 = vsel %vm861, %v863, %v859
      %v865 = vmul.f32 1.0, %v864
      %v866 = vrcp.pop %v844
      %v867 = vmul.f32 %v844, %v866
      %v868 = vsub.f32 1.0, %v867
      %v869 = vmul.f32 %v866, %v868
      %v870 = vadd.f32 %v866, %v869
      %vm871 = vweird.f32 %v844
      %vm872 = vweird.f32 %v866
      %vm873 = vmor %vm871, %vm872
      %v874 = vsel %vm873, %v866, %v870
      %v875 = vand.u32 2147483647, %v844
      %vm876 = vcmp.eq.f32.partialorder %v875, 8.507059e+37
      %v877 = vand.u32 %v844, 2147483648
      %v878 = vor.u32 1.1754944e-38, %v877
      %v879 = vsel %vm876, %v878, %v874
      %v880 = vmul.f32 1.0, %v879
      %v881 = vrcp.pop %v845
      %v882 = vmul.f32 %v845, %v881
      %v883 = vsub.f32 1.0, %v882
      %v884 = vmul.f32 %v881, %v883
      %v885 = vadd.f32 %v881, %v884
      %vm886 = vweird.f32 %v845
      %vm887 = vweird.f32 %v881
      %vm888 = vmor %vm886, %vm887
      %v889 = vsel %vm888, %v881, %v885
      %v890 = vand.u32 2147483647, %v845
      %vm891 = vcmp.eq.f32.partialorder %v890, 8.507059e+37
      %v892 = vand.u32 %v845, 2147483648
      %v893 = vor.u32 1.1754944e-38, %v892
      %v894 = vsel %vm891, %v893, %v889
      %v895 = vmul.f32 1.0, %v894
      %v896 = vrcp.pop %v846
      %v897 = vmul.f32 %v846, %v896
      %v898 = vsub.f32 1.0, %v897
      %v899 = vmul.f32 %v896, %v898
      %v900 = vadd.f32 %v896, %v899
      %vm901 = vweird.f32 %v846
      %vm902 = vweird.f32 %v896
      %vm903 = vmor %vm901, %vm902
      %v904 = vsel %vm903, %v896, %v900
      %v905 = vand.u32 2147483647, %v846
      %vm906 = vcmp.eq.f32.partialorder %v905, 8.507059e+37
      %v907 = vand.u32 %v846, 2147483648
      %v908 = vor.u32 1.1754944e-38, %v907
      %v909 = vsel %vm906, %v908, %v904
      %v910 = vmul.f32 1.0, %v909
      %v911 = vrcp.pop %v847
      %v912 = vmul.f32 %v847, %v911
      %v913 = vsub.f32 1.0, %v912
      %v914 = vmul.f32 %v911, %v913
      %v915 = vadd.f32 %v911, %v914
      %vm916 = vweird.f32 %v847
      %vm917 = vweird.f32 %v911
      %vm918 = vmor %vm916, %vm917
      %v919 = vsel %vm918, %v911, %v915
      %v920 = vand.u32 2147483647, %v847
      %vm921 = vcmp.eq.f32.partialorder %v920, 8.507059e+37
      %v922 = vand.u32 %v847, 2147483648
      %v923 = vor.u32 1.1754944e-38, %v922
      %v924 = vsel %vm921, %v923, %v919
      %v925 = vmul.f32 1.0, %v924
      %v926 = vrcp.pop %v848
      %v927 = vmul.f32 %v848, %v926
      %v928 = vsub.f32 1.0, %v927
      %v929 = vmul.f32 %v926, %v928
      %v930 = vadd.f32 %v926, %v929
      %vm931 = vweird.f32 %v848
      %vm932 = vweird.f32 %v926
      %vm933 = vmor %vm931, %vm932
      %v934 = vsel %vm933, %v926, %v930
      %v935 = vand.u32 2147483647, %v848
      %vm936 = vcmp.eq.f32.partialorder %v935, 8.507059e+37
      %v937 = vand.u32 %v848, 2147483648
      %v938 = vor.u32 1.1754944e-38, %v937
      %v939 = vsel %vm936, %v938, %v934
      %v940 = vmul.f32 1.0, %v939
      %v941 = vrcp.pop %v849
      %v942 = vmul.f32 %v849, %v941
      %v943 = vsub.f32 1.0, %v942
      %v944 = vmul.f32 %v941, %v943
      %v945 = vadd.f32 %v941, %v944
      %vm946 = vweird.f32 %v849
      %vm947 = vweird.f32 %v941
      %vm948 = vmor %vm946, %vm947
      %v949 = vsel %vm948, %v941, %v945
      %v950 = vand.u32 2147483647, %v849
      %vm951 = vcmp.eq.f32.partialorder %v950, 8.507059e+37
      %v952 = vand.u32 %v849, 2147483648
      %v953 = vor.u32 1.1754944e-38, %v952
      %v954 = vsel %vm951, %v953, %v949
      %v955 = vmul.f32 1.0, %v954
      %v956 = vrcp.pop %v850
      %v957 = vmul.f32 %v850, %v956
      %v958 = vsub.f32 1.0, %v957
      %v959 = vmul.f32 %v956, %v958
      %v960 = vadd.f32 %v956, %v959
      %vm961 = vweird.f32 %v850
      %vm962 = vweird.f32 %v956
      %vm963 = vmor %vm961, %vm962
      %v964 = vsel %vm963, %v956, %v960
      %v965 = vand.u32 2147483647, %v850
      %vm966 = vcmp.eq.f32.partialorder %v965, 8.507059e+37
      %v967 = vand.u32 %v850, 2147483648
      %v968 = vor.u32 1.1754944e-38, %v967
      %v969 = vsel %vm966, %v968, %v964
      %v970 = vmul.f32 1.0, %v969
      %v971 = vmul.f32 %v811, %v865
      %v972 = vmul.f32 %v812, %v880
      %v973 = vmul.f32 %v813, %v895
      %v974 = vmul.f32 %v814, %v910
      %v975 = vmul.f32 %v815, %v925
      %v976 = vmul.f32 %v816, %v940
      %v977 = vmul.f32 %v817, %v955
      %v978 = vmul.f32 %v818, %v970
      %v979 = vld [vmem:[#allocation2] sm:$0x1]
      %v980 = vadd.f32 %v971, %v972
      %v981 = vadd.f32 %v980, %v973
      %v982 = vadd.f32 %v981, %v974
      %v983 = vadd.f32 %v982, %v975
      %v984 = vadd.f32 %v983, %v976
      %v985 = vadd.f32 %v984, %v977
      %v986 = vadd.f32 %v985, %v978
      %v987 = vrot.slane %v986, 4
      %v988 = vadd.f32 %v986, %v987
      %v989 = vrot.slane %v988, 2
      %v990 = vadd.f32 %v988, %v989
      %v991 = vrot.slane %v990, 1
      %v992 = vadd.f32 %v990, %v991
      %v993 = vadd.f32 %v979, %v992
      %994 = vst [vmem:[#allocation2] sm:$0x1] %v993
      // Predicated region
      $region45: #{model_forward.1} parent=39 // pred_check
        %p995 = pneg %p238
      $region46: #{model_forward.1} parent=39 // pred_check_branch
        %997 = sbr.rel (%p995) target = $region48
      $region47: #{model_forward.1} parent=39 // pred_region
        %v998 = vld [vmem:[#allocation2] sm:$0x1]
        %v999 = vmul.f32 %v998, 0.015625
        %v1000 = vld [vmem:[%s3] sm:$0x1]
        %v1001 = vmul.f32 %v999, %v1000
        %vm1002 = vcmask 1040384
        %v1003 = vsel %vm1002, %v1001, 0.0
        %1004 = vadd.xlane.f32.xlu0 %v1003
        %v1005 = vpop.xlane.xlu0 %1004
        %v1006 = vld [vmem:[#allocation3] sm:$0x1]
        %v1007 = vadd.f32 %v1005, %v1006
        %s1009 = vtos %v1007
        %v1010 = vstv %s1009
        %1012 = vst [vmem:[%s236] sm:$0xff] %v1010
      $region48: #{model_forward.1} parent=39 // pred_fallthru
        _
      %p1013 = scmp.lt.s32.totalorder %s22, 1
      %s1014 = scalar_select %p1013, %s22, 1
      %s1015 = smul.addr %s1014, 8
      %s1016 = scalar_lea.vmem %s5, %s1015
      // Predicated region
      $region49: #{model_forward.1} parent=39 // pred_check
        %p1017 = pneg %p158
      $region50: #{model_forward.1} parent=39 // pred_check_branch
        %1019 = sbr.rel (%p1017) target = $region52
      $region51: #{model_forward.1} parent=39 // pred_region
        _
      $region52: #{model_forward.1} parent=39 // pred_fallthru
        _
    $region40: #{model_forward.1} parent=5 // pred_fallthru
      _
    %p1020 = scmp.le.s32.totalorder 2, %s13
    // Predicated region
    $region53: #{model_forward.1} parent=5 // pred_check
      %p1021 = pneg %p1020
    $region54: #{model_forward.1} parent=5 // pred_check_branch
      %1023 = sbr.rel (%p1021) target = $region56
    $region55: #{model_forward.1} parent=5 // pred_region
      %s1024 = ssub.s32 %s13, 2
      // Predicated region
      $region57: #{model_forward.1} parent=55 // pred_check
        %p1025 = pneg %p164
      $region58: #{model_forward.1} parent=55 // pred_check_branch
        %1027 = sbr.rel (%p1025) target = $region60
      $region59: #{model_forward.1} parent=55 // pred_region
        %p1028 = scmp.lt.s32.totalorder %s24, 1
        %s1029 = scalar_select %p1028, %s24, 1
        %s1030 = smul.addr %s1029, 8
        %s1031 = scalar_lea.vmem %s5, %s1030
      $region60: #{model_forward.1} parent=55 // pred_fallthru
        _
    $region56: #{model_forward.1} parent=5 // pred_fallthru
      _
  $region6: #{model_forward.1} parent=0 // loop_footer
    %s17 = sadd.s32 1, %s13
  $region7: #{model_forward.1} parent=0 // loop_footer_branch
    %12 = sbr.rel target = $region3
  $region8: #{model_forward.1} parent=0 // loop_exit
    _

</llo_original>
